<compile_context>
chip_gen: v7x
topology: tpu7x:2x2x1
jax: 0.10.0
libtpu: 0.0.40
codegen_flags: <defaults>
</compile_context>

<pallas_src>
import math

import jax
import jax.numpy as jnp
from jax.experimental import pallas as pl
from jax.experimental.pallas import tpu as pltpu


# ---------------------------------------------------------------------------
# Kernels
# ---------------------------------------------------------------------------
def _linear_kernel_accum_out(x_ref, wt_ref, o_ref):
    """f32 output block is resident across the K axis -> use it as the accumulator."""
    k = pl.program_id(2)

    @pl.when(k == 0)
    def _init():
        o_ref[...] = jnp.zeros_like(o_ref)

    o_ref[...] += jnp.dot(x_ref[...], wt_ref[...], preferred_element_type=jnp.float32)


def _linear_kernel_scratch(x_ref, wt_ref, o_ref, acc_ref):
    """Narrow output dtype: accumulate in f32 VMEM scratch, cast on the last K step."""
    k = pl.program_id(2)

    @pl.when(k == 0)
    def _init():
        acc_ref[...] = jnp.zeros_like(acc_ref)

    acc_ref[...] += jnp.dot(x_ref[...], wt_ref[...], preferred_element_type=jnp.float32)

    @pl.when(k == pl.num_programs(2) - 1)
    def _store():
        o_ref[...] = acc_ref[...].astype(o_ref.dtype)


# ---------------------------------------------------------------------------
# Tile selection
# ---------------------------------------------------------------------------
def _pick_n_tile(d_out: int) -> int:
    for cand in (1024, 512, 256):
        if d_out % cand == 0:
            return cand
    # NOTE: 128 underfills the 256-wide MXU on v6e/v7x; padding d_out to a multiple of
    # 256 in the wrapper would avoid this, not done here to keep the wrapper copy-free.
    return 128  # caller guarantees d_out % 128 == 0


def _pick_k_tile(d_in: int) -> int:
    for cand in (2048, 1024, 512, 256, 128):
        if d_in % cand == 0:
            return cand
    return 128  # unreachable: caller guarantees d_in % 128 == 0


def _pick_m_tile(m: int) -> int:
    if m <= 1024:
        return m  # full extent is always a legal block dim, even if not a multiple of 8
    best, best_waste = 1024, None
    for cand in (1024, 768, 512, 384, 256, 128):  # all multiples of 8
        waste = cand * pl.cdiv(m, cand) - m       # padded rows in the last M block
        if best_waste is None or waste < best_waste:
            best, best_waste = cand, waste
    return best


_VMEM_BUDGET = 24 * 1024 * 1024  # headroom under the 32 MiB scoped limit (v7x-safe)


def _shrink_to_vmem(tm, tn, tk, bx, bw, bo, acc_bytes):
    def footprint(tm_, tn_, tk_):
        # inputs & output are double-buffered by the pipeline; scratch is single-buffered
        return 2 * (tm_ * tk_ * bx + tk_ * tn_ * bw + tm_ * tn_ * bo) + acc_bytes(tm_, tn_)

    while footprint(tm, tn, tk) > _VMEM_BUDGET:
        if tk > 256:
            tk //= 2              # halving keeps divisibility of d_in
        elif tm > 256 and tm % 16 == 0:
            tm //= 2
        elif tn > 256:
            tn //= 2
        else:
            break
    return tm, tn, tk


# ---------------------------------------------------------------------------
# Wrapper
# ---------------------------------------------------------------------------
def prepare_weight(w: jax.Array, compute_dtype=jnp.bfloat16) -> jax.Array:
    """One-time transform of the (d_out, d_in) parameter for the fast path.

    Transposes to (d_in, d_out) so the kernel output is lane-dense and casts to the MXU
    compute dtype. Do this at init / weight-update time so the per-call HBM transpose
    pass disappears.
    """
    return jnp.transpose(w).astype(compute_dtype)


def my_linear(x: jax.Array, w: jax.Array, *, wt: jax.Array | None = None,
              compute_in_bf16: bool = True) -> jax.Array:
    """Pallas equivalent of MyLinear.forward: einsum('... d_in, d_out d_in -> ... d_out').

    x: (..., d_in); w: (d_out, d_in) — the PyTorch parameter layout.
    wt: optional pre-transposed weight from prepare_weight() (shape (d_in, d_out));
        passing it avoids a full HBM read+write transpose pass on every call.
    compute_in_bf16: feed bf16 operands to the MXU (f32 accumulation, f32 output).
    """
    *lead, d_in = x.shape
    d_out, d_in_w = w.shape
    assert d_in == d_in_w, "feature dim mismatch"
    m = int(math.prod(lead)) if lead else 1
    out_dtype = jnp.result_type(x.dtype, w.dtype)

    # Tiny / misaligned problems can't fill a vreg let alone the MXU; launch + DMA
    # overhead dominates and XLA's fused path is faster. Keeps the Pallas path on
    # cleanly (8,128)-tileable shapes (exact K/N tiling, no masked partial stores).
    if m < 64 or d_in < 128 or d_out < 128 or d_in % 128 or d_out % 128:
        return jnp.einsum("...i,oi->...o", x, w).astype(out_dtype)

    # bf16 operands halve HBM bytes and hit native MXU rate on v6e/v7x; accumulation
    # stays f32 and output stays out_dtype, so semantics hold up to bf16 rounding.
    if compute_in_bf16 and out_dtype == jnp.float32:
        compute_dtype = jnp.bfloat16
    else:
        compute_dtype = out_dtype

    x2d = x.reshape(m, d_in).astype(compute_dtype)
    if wt is None:
        # Per-call fallback: a full HBM pass over W. Prefer prepare_weight() at init.
        wt = jnp.transpose(w)
    wt = wt.astype(compute_dtype)
    assert wt.shape == (d_in, d_out), "wt must be the pre-transposed (d_in, d_out) weight"

    use_scratch = out_dtype != jnp.float32  # f32 output doubles as the accumulator
    bx = bw = jnp.dtype(compute_dtype).itemsize
    bo = jnp.dtype(out_dtype).itemsize

    tm = _pick_m_tile(m)
    tn = _pick_n_tile(d_out)
    tk = _pick_k_tile(d_in)
    acc_bytes = (lambda tm_, tn_: tm_ * tn_ * 4) if use_scratch else (lambda tm_, tn_: 0)
    tm, tn, tk = _shrink_to_vmem(tm, tn, tk, bx, bw, bo, acc_bytes)

    # Ragged last M block is safe: OOB rows read garbage, their writes are dropped,
    # and matmul rows are independent. K and N tiling are exact by construction.
    grid = (pl.cdiv(m, tm), d_out // tn, d_in // tk)

    # Advisory cost model with tile re-streaming: x re-read once per N tile, Wt once
    # per M tile.
    cost = pl.CostEstimate(
        flops=2 * m * d_in * d_out,
        transcendentals=0,
        bytes_accessed=m * d_in * bx * grid[1]
        + d_in * d_out * bw * grid[0]
        + m * d_out * bo,
    )

    if use_scratch:
        kernel = _linear_kernel_scratch
        scratch_shapes = [pltpu.VMEM((tm, tn), jnp.float32)]
    else:
        kernel = _linear_kernel_accum_out
        scratch_shapes = []

    out2d = pl.pallas_call(
        kernel,
        out_shape=jax.ShapeDtypeStruct((m, d_out), out_dtype),
        grid_spec=pltpu.PrefetchScalarGridSpec(
            num_scalar_prefetch=0,
            grid=grid,
            in_specs=[
                pl.BlockSpec((tm, tk), lambda i, j, k: (i, k)),  # x tile
                pl.BlockSpec((tk, tn), lambda i, j, k: (k, j)),  # Wt tile
            ],
            out_specs=pl.BlockSpec((tm, tn), lambda i, j, k: (i, j)),
            scratch_shapes=scratch_shapes,
        ),
        compiler_params=pltpu.CompilerParams(
            # M/N parallel (megacore sharding on v7x), K reduction innermost.
            dimension_semantics=("parallel", "parallel", "arbitrary"),
            vmem_limit_bytes=32 * 1024 * 1024,
        ),
        cost_estimate=cost,
    )(x2d, wt)

    return out2d.reshape(*lead, d_out)


def init_linear_weight(key, in_features: int, out_features: int, dtype=jnp.float32):
    """Matches nn.init.trunc_normal_(w, std=std, a=-3*std, b=3*std)."""
    std = math.sqrt(2.0 / (in_features + out_features))
    unit = jax.random.truncated_normal(
        key, lower=-3.0, upper=3.0, shape=(out_features, in_features), dtype=jnp.float32
    )
    return (unit * std).astype(dtype)


if __name__ == "__main__":
    key = jax.random.PRNGKey(0)
    k_x, k_w = jax.random.split(key)

    # --- Pallas path: small but MXU/lane-aligned shapes ---
    batch, seq, d_in, d_out = 2, 128, 256, 256
    x = jax.random.normal(k_x, (batch, seq, d_in), dtype=jnp.float32)
    w = init_linear_weight(k_w, d_in, d_out, dtype=jnp.float32)
    wt = prepare_weight(w)  # one-time transpose + bf16 cast (done at "init" time)

    y = my_linear(x, w, wt=wt)  # bf16 operands, f32 accumulation & output
    jax.block_until_ready(y)
    assert y.shape == (batch, seq, d_out)
    assert y.dtype == jnp.float32

    y_ref = jnp.einsum("...i,oi->...o", x, w, precision=jax.lax.Precision.HIGHEST)
    rel_err = jnp.linalg.norm(y - y_ref) / (jnp.linalg.norm(y_ref) + 1e-12)
    assert float(rel_err) < 1e-2, f"bf16-operand relative error too large: {float(rel_err)}"

    # --- bf16-in / bf16-out exercises the scratch-accumulator kernel ---
    y_bf = my_linear(x.astype(jnp.bfloat16), w.astype(jnp.bfloat16), wt=wt)
    jax.block_until_ready(y_bf)
    assert y_bf.dtype == jnp.bfloat16
    rel_err_bf = jnp.linalg.norm(y_bf.astype(jnp.float32) - y_ref) / (
        jnp.linalg.norm(y_ref) + 1e-12
    )
    assert float(rel_err_bf) < 3e-2, f"bf16-out relative error too large: {float(rel_err_bf)}"

    # --- Tiny case (original demo shapes) exercises the XLA fallback path ---
    x_s = jax.random.normal(k_x, (2, 8, 32), dtype=jnp.float32)
    w_s = init_linear_weight(k_w, 32, 16, dtype=jnp.float32)
    y_s = my_linear(x_s, w_s)
    jax.block_until_ready(y_s)
    y_s_ref = jnp.einsum("...i,oi->...o", x_s, w_s)
    assert y_s.shape == (2, 8, 16)
    assert jnp.allclose(y_s, y_s_ref, atol=1e-5, rtol=1e-5)

    print("KERNEL_OK")
</pallas_src>

<mosaic_0001>
module attributes {stable_mosaic.version = 11 : i64} {
  func.func @_linear_kernel_accum_out(%arg0: i32, %arg1: i32, %arg2: i32, %arg3: memref<256x256xbf16, #tpu.memory_space<vmem>>, %arg4: memref<256x256xbf16, #tpu.memory_space<vmem>>, %arg5: memref<256x256xf32, #tpu.memory_space<vmem>>) attributes {dimension_semantics = [#tpu.dimension_semantics<parallel>, #tpu.dimension_semantics<parallel>, #tpu.dimension_semantics<arbitrary>], iteration_bounds = array<i64: 1, 1, 1>, scalar_prefetch = 0 : i64, scratch_operands = 0 : i64, tpu.core_type = #tpu.core_type<tc>, window_params = [{transform_indices = @transform_0, window_bounds = array<i64: 256, 256>}, {transform_indices = @transform_1, window_bounds = array<i64: 256, 256>}, {transform_indices = @transform_2, window_bounds = array<i64: 256, 256>}]} {
    %c0_i32 = arith.constant 0 : i32
    %0 = arith.cmpi eq, %arg2, %c0_i32 : i32
    %1 = arith.extui %0 : i1 to i32
    %c0_i32_0 = arith.constant 0 : i32
    %2 = arith.cmpi ne, %1, %c0_i32_0 : i32
    scf.if %2 {
      %cst_8 = arith.constant 0.000000e+00 : f32
      %9 = vector.broadcast %cst_8 : f32 to vector<256x256xf32>
      %c0_9 = arith.constant 0 : index
      %c0_10 = arith.constant 0 : index
      %10 = vector.load %arg5[%c0_9, %c0_10] : memref<256x256xf32, #tpu.memory_space<vmem>>, vector<256x256xf32>
      tpu.vector_store %arg5[%c0_9, %c0_10], %9 {strides = array<i32>} : memref<256x256xf32, #tpu.memory_space<vmem>>, vector<256x256xf32>,
    } else {
    }
    %c0 = arith.constant 0 : index
    %c0_1 = arith.constant 0 : index
    %3 = vector.load %arg5[%c0, %c0_1] : memref<256x256xf32, #tpu.memory_space<vmem>>, vector<256x256xf32>
    %c0_2 = arith.constant 0 : index
    %c0_3 = arith.constant 0 : index
    %4 = vector.load %arg3[%c0_2, %c0_3] : memref<256x256xbf16, #tpu.memory_space<vmem>>, vector<256x256xbf16>
    %c0_4 = arith.constant 0 : index
    %c0_5 = arith.constant 0 : index
    %5 = vector.load %arg4[%c0_4, %c0_5] : memref<256x256xbf16, #tpu.memory_space<vmem>>, vector<256x256xbf16>
    %cst = arith.constant dense<0.000000e+00> : vector<256x256xf32>
    %6 = tpu.matmul %4, %5, %cst {dimension_numbers = #tpu.dot_dimension_numbers<[1], [0], [0], [1], [0, 0, 1, 1], [], []>} : vector<256x256xbf16>, vector<256x256xbf16>, vector<256x256xf32> -> vector<256x256xf32>
    %7 = arith.addf %3, %6 : vector<256x256xf32>
    %c0_6 = arith.constant 0 : index
    %c0_7 = arith.constant 0 : index
    %8 = vector.load %arg5[%c0_6, %c0_7] : memref<256x256xf32, #tpu.memory_space<vmem>>, vector<256x256xf32>
    tpu.vector_store %arg5[%c0_6, %c0_7], %7 {strides = array<i32>} : memref<256x256xf32, #tpu.memory_space<vmem>>, vector<256x256xf32>,
    return
  }
  func.func @transform_0(%arg0: i32, %arg1: i32, %arg2: i32) -> (i32, i32) {
    %c0_i32 = arith.constant 0 : i32
    return %arg0, %arg2 : i32, i32
  }
  func.func @transform_1(%arg0: i32, %arg1: i32, %arg2: i32) -> (i32, i32) {
    %c0_i32 = arith.constant 0 : i32
    return %arg2, %arg1 : i32, i32
  }
  func.func @transform_2(%arg0: i32, %arg1: i32, %arg2: i32) -> (i32, i32) {
    %c0_i32 = arith.constant 0 : i32
    return %arg0, %arg1 : i32, i32
  }
}

</mosaic_0001>

<llo_original>
// kernel: tpu_custom_call.1
$region0: #{tpu_custom_call.1}
  #allocation0 [shape = 'u32[]', space=smem, size = 0x4, offset = 0x4, fixed_abs, tag = 'smem constant byte address 0x4 - core index']
  #allocation1 [shape = 'u32[144,128]{1,0:T(1,128)}', space=vmem, size = 0x12000, scoped, tag = 'internal scratch']
  %s0 = inlined_call_operand.hbm [shape: bf16[256,256], index: 0, kind: input, shape index: {}]
  %s1 = inlined_call_operand.hbm [shape: bf16[256,256], index: 1, kind: input, shape index: {}]
  %s2 = inlined_call_operand.hbm [shape: f32[256,256], index: 2, kind: output, shape index: {}]
  %s3 = sld [smem:[#allocation0]]
  $region30: #{tpu_custom_call.1} parent=0
    _
  %s5 = ssub.s32 1, %s3
  %s6 = scalar_select 0, %s5, %s3
  $region1: #{tpu_custom_call.1} parent=0
    #allocation2 [shape = 'u8[131072]{0}', space=vmem, size = 0x20000, scoped, tag = 'input window, operand 0, single buffered']
    #allocation3 [shape = 's32[1]{0}', space=sflag, size = 0x4, scoped, tag = 'scoped memory for tpu_custom_call.1']
    #allocation4 [shape = 's32[1]{0}', space=sflag, size = 0x4, scoped, tag = 'scoped memory for tpu_custom_call.1']
    #allocation5 [shape = 'u8[131072]{0}', space=vmem, size = 0x20000, scoped, tag = 'input window, operand 1, single buffered']
    #allocation6 [shape = 's32[1]{0}', space=sflag, size = 0x4, scoped, tag = 'scoped memory for tpu_custom_call.1']
    #allocation7 [shape = 'u8[262144]{0}', space=vmem, size = 0x40000, scoped, tag = 'output window, operand 0, single buffered']
    %7 = vsyncpa [#allocation3], 0
    %8 = vsyncpa [#allocation6], 0
    %9 = vsyncpa [#allocation4], 0
    // Predicated region
    $region2: #{tpu_custom_call.1} parent=1 // pred_check
      _
    $region3: #{tpu_custom_call.1} parent=1 // pred_check_branch
      %11 = sbr.rel (0) target = $region5
    $region4: #{tpu_custom_call.1} parent=1 // pred_region
      %s13 = ssub.s32 4096, 4096
      %14 = vsyncadd [#allocation3], %s13
      %s15 = sshll.u32 [#allocation2], 4
      %s16 = int_to_ptr.vmem [resolvable:$true] %s15
      %21 = dma.hbm_to_vmem [thread:$0]  %s0, 4096, %s16, [#allocation3], 128, 128, 8
    $region5: #{tpu_custom_call.1} parent=1 // pred_fallthru
      _
    // Predicated region
    $region6: #{tpu_custom_call.1} parent=1 // pred_check
      _
    $region7: #{tpu_custom_call.1} parent=1 // pred_check_branch
      %23 = sbr.rel (0) target = $region9
    $region8: #{tpu_custom_call.1} parent=1 // pred_region
      %s25 = ssub.s32 4096, 4096
      %26 = vsyncadd [#allocation6], %s25
      %s27 = sshll.u32 [#allocation5], 4
      %s28 = int_to_ptr.vmem [resolvable:$true] %s27
      %33 = dma.hbm_to_vmem [thread:$0]  %s1, 4096, %s28, [#allocation6], 128, 128, 8
    $region9: #{tpu_custom_call.1} parent=1 // pred_fallthru
      _
    // Predicated region
    $region10: #{tpu_custom_call.1} parent=1 // pred_check
      _
    $region11: #{tpu_custom_call.1} parent=1 // pred_check_branch
      %35 = sbr.rel (0) target = $region13
    $region12: #{tpu_custom_call.1} parent=1 // pred_region
      %36 = dma.done [#allocation3], 4096
    $region13: #{tpu_custom_call.1} parent=1 // pred_fallthru
      _
    // Predicated region
    $region14: #{tpu_custom_call.1} parent=1 // pred_check
      _
    $region15: #{tpu_custom_call.1} parent=1 // pred_check_branch
      %38 = sbr.rel (0) target = $region17
    $region16: #{tpu_custom_call.1} parent=1 // pred_region
      %39 = dma.done [#allocation6], 4096
    $region17: #{tpu_custom_call.1} parent=1 // pred_fallthru
      _
    %p40 = scmp.eq.s32.totalorder 0, 0
    // Predicated region
    $region18: #{tpu_custom_call.1} parent=1 // pred_check
      %p41 = pneg %p40
    $region19: #{tpu_custom_call.1} parent=1 // pred_check_branch
      %43 = sbr.rel (%p41) target = $region21
    $region20: #{tpu_custom_call.1} parent=1 // pred_region
      %44 = vst [vmem:[#allocation7] sm:$0xff] 0.0
      %45 = vst [vmem:[#allocation7 + $0x8] sm:$0xff] 0.0
      %46 = vst [vmem:[#allocation7 + $0x10] sm:$0xff] 0.0
      %47 = vst [vmem:[#allocation7 + $0x18] sm:$0xff] 0.0
      %48 = vst [vmem:[#allocation7 + $0x20] sm:$0xff] 0.0
      %49 = vst [vmem:[#allocation7 + $0x28] sm:$0xff] 0.0
      %50 = vst [vmem:[#allocation7 + $0x30] sm:$0xff] 0.0
      %51 = vst [vmem:[#allocation7 + $0x38] sm:$0xff] 0.0
      %52 = vst [vmem:[#allocation7 + $0x40] sm:$0xff] 0.0
      %53 = vst [vmem:[#allocation7 + $0x48] sm:$0xff] 0.0
      %54 = vst [vmem:[#allocation7 + $0x50] sm:$0xff] 0.0
      %55 = vst [vmem:[#allocation7 + $0x58] sm:$0xff] 0.0
      %56 = vst [vmem:[#allocation7 + $0x60] sm:$0xff] 0.0
      %57 = vst [vmem:[#allocation7 + $0x68] sm:$0xff] 0.0
      %58 = vst [vmem:[#allocation7 + $0x70] sm:$0xff] 0.0
      %59 = vst [vmem:[#allocation7 + $0x78] sm:$0xff] 0.0
      %60 = vst [vmem:[#allocation7 + $0x80] sm:$0xff] 0.0
      %61 = vst [vmem:[#allocation7 + $0x88] sm:$0xff] 0.0
      %62 = vst [vmem:[#allocation7 + $0x90] sm:$0xff] 0.0
      %63 = vst [vmem:[#allocation7 + $0x98] sm:$0xff] 0.0
      %64 = vst [vmem:[#allocation7 + $0xa0] sm:$0xff] 0.0
      %65 = vst [vmem:[#allocation7 + $0xa8] sm:$0xff] 0.0
      %66 = vst [vmem:[#allocation7 + $0xb0] sm:$0xff] 0.0
      %67 = vst [vmem:[#allocation7 + $0xb8] sm:$0xff] 0.0
      %68 = vst [vmem:[#allocation7 + $0xc0] sm:$0xff] 0.0
      %69 = vst [vmem:[#allocation7 + $0xc8] sm:$0xff] 0.0
      %70 = vst [vmem:[#allocation7 + $0xd0] sm:$0xff] 0.0
      %71 = vst [vmem:[#allocation7 + $0xd8] sm:$0xff] 0.0
      %72 = vst [vmem:[#allocation7 + $0xe0] sm:$0xff] 0.0
      %73 = vst [vmem:[#allocation7 + $0xe8] sm:$0xff] 0.0
      %74 = vst [vmem:[#allocation7 + $0xf0] sm:$0xff] 0.0
      %75 = vst [vmem:[#allocation7 + $0xf8] sm:$0xff] 0.0
      %76 = vst [vmem:[#allocation7 + $0x100] sm:$0xff] 0.0
      %77 = vst [vmem:[#allocation7 + $0x108] sm:$0xff] 0.0
      %78 = vst [vmem:[#allocation7 + $0x110] sm:$0xff] 0.0
      %79 = vst [vmem:[#allocation7 + $0x118] sm:$0xff] 0.0
      %80 = vst [vmem:[#allocation7 + $0x120] sm:$0xff] 0.0
      %81 = vst [vmem:[#allocation7 + $0x128] sm:$0xff] 0.0
      %82 = vst [vmem:[#allocation7 + $0x130] sm:$0xff] 0.0
      %83 = vst [vmem:[#allocation7 + $0x138] sm:$0xff] 0.0
      %84 = vst [vmem:[#allocation7 + $0x140] sm:$0xff] 0.0
      %85 = vst [vmem:[#allocation7 + $0x148] sm:$0xff] 0.0
      %86 = vst [vmem:[#allocation7 + $0x150] sm:$0xff] 0.0
      %87 = vst [vmem:[#allocation7 + $0x158] sm:$0xff] 0.0
      %88 = vst [vmem:[#allocation7 + $0x160] sm:$0xff] 0.0
      %89 = vst [vmem:[#allocation7 + $0x168] sm:$0xff] 0.0
      %90 = vst [vmem:[#allocation7 + $0x170] sm:$0xff] 0.0
      %91 = vst [vmem:[#allocation7 + $0x178] sm:$0xff] 0.0
      %92 = vst [vmem:[#allocation7 + $0x180] sm:$0xff] 0.0
      %93 = vst [vmem:[#allocation7 + $0x188] sm:$0xff] 0.0
      %94 = vst [vmem:[#allocation7 + $0x190] sm:$0xff] 0.0
      %95 = vst [vmem:[#allocation7 + $0x198] sm:$0xff] 0.0
      %96 = vst [vmem:[#allocation7 + $0x1a0] sm:$0xff] 0.0
      %97 = vst [vmem:[#allocation7 + $0x1a8] sm:$0xff] 0.0
      %98 = vst [vmem:[#allocation7 + $0x1b0] sm:$0xff] 0.0
      %99 = vst [vmem:[#allocation7 + $0x1b8] sm:$0xff] 0.0
      %100 = vst [vmem:[#allocation7 + $0x1c0] sm:$0xff] 0.0
      %101 = vst [vmem:[#allocation7 + $0x1c8] sm:$0xff] 0.0
      %102 = vst [vmem:[#allocation7 + $0x1d0] sm:$0xff] 0.0
      %103 = vst [vmem:[#allocation7 + $0x1d8] sm:$0xff] 0.0
      %104 = vst [vmem:[#allocation7 + $0x1e0] sm:$0xff] 0.0
      %105 = vst [vmem:[#allocation7 + $0x1e8] sm:$0xff] 0.0
      %106 = vst [vmem:[#allocation7 + $0x1f0] sm:$0xff] 0.0
      %107 = vst [vmem:[#allocation7 + $0x1f8] sm:$0xff] 0.0
    $region21: #{tpu_custom_call.1} parent=1 // pred_fallthru
      _
    %v108 = vld [vmem:[#allocation7] sm:$0xff]
    %v109 = vld [vmem:[#allocation7 + $0x8] sm:$0xff]
    %v110 = vld [vmem:[#allocation7 + $0x10] sm:$0xff]
    %v111 = vld [vmem:[#allocation7 + $0x18] sm:$0xff]
    %v112 = vld [vmem:[#allocation7 + $0x20] sm:$0xff]
    %v113 = vld [vmem:[#allocation7 + $0x28] sm:$0xff]
    %v114 = vld [vmem:[#allocation7 + $0x30] sm:$0xff]
    %v115 = vld [vmem:[#allocation7 + $0x38] sm:$0xff]
    %v116 = vld [vmem:[#allocation7 + $0x40] sm:$0xff]
    %v117 = vld [vmem:[#allocation7 + $0x48] sm:$0xff]
    %v118 = vld [vmem:[#allocation7 + $0x50] sm:$0xff]
    %v119 = vld [vmem:[#allocation7 + $0x58] sm:$0xff]
    %v120 = vld [vmem:[#allocation7 + $0x60] sm:$0xff]
    %v121 = vld [vmem:[#allocation7 + $0x68] sm:$0xff]
    %v122 = vld [vmem:[#allocation7 + $0x70] sm:$0xff]
    %v123 = vld [vmem:[#allocation7 + $0x78] sm:$0xff]
    %v124 = vld [vmem:[#allocation7 + $0x80] sm:$0xff]
    %v125 = vld [vmem:[#allocation7 + $0x88] sm:$0xff]
    %v126 = vld [vmem:[#allocation7 + $0x90] sm:$0xff]
    %v127 = vld [vmem:[#allocation7 + $0x98] sm:$0xff]
    %v128 = vld [vmem:[#allocation7 + $0xa0] sm:$0xff]
    %v129 = vld [vmem:[#allocation7 + $0xa8] sm:$0xff]
    %v130 = vld [vmem:[#allocation7 + $0xb0] sm:$0xff]
    %v131 = vld [vmem:[#allocation7 + $0xb8] sm:$0xff]
    %v132 = vld [vmem:[#allocation7 + $0xc0] sm:$0xff]
    %v133 = vld [vmem:[#allocation7 + $0xc8] sm:$0xff]
    %v134 = vld [vmem:[#allocation7 + $0xd0] sm:$0xff]
    %v135 = vld [vmem:[#allocation7 + $0xd8] sm:$0xff]
    %v136 = vld [vmem:[#allocation7 + $0xe0] sm:$0xff]
    %v137 = vld [vmem:[#allocation7 + $0xe8] sm:$0xff]
    %v138 = vld [vmem:[#allocation7 + $0xf0] sm:$0xff]
    %v139 = vld [vmem:[#allocation7 + $0xf8] sm:$0xff]
    %v140 = vld [vmem:[#allocation7 + $0x100] sm:$0xff]
    %v141 = vld [vmem:[#allocation7 + $0x108] sm:$0xff]
    %v142 = vld [vmem:[#allocation7 + $0x110] sm:$0xff]
    %v143 = vld [vmem:[#allocation7 + $0x118] sm:$0xff]
    %v144 = vld [vmem:[#allocation7 + $0x120] sm:$0xff]
    %v145 = vld [vmem:[#allocation7 + $0x128] sm:$0xff]
    %v146 = vld [vmem:[#allocation7 + $0x130] sm:$0xff]
    %v147 = vld [vmem:[#allocation7 + $0x138] sm:$0xff]
    %v148 = vld [vmem:[#allocation7 + $0x140] sm:$0xff]
    %v149 = vld [vmem:[#allocation7 + $0x148] sm:$0xff]
    %v150 = vld [vmem:[#allocation7 + $0x150] sm:$0xff]
    %v151 = vld [vmem:[#allocation7 + $0x158] sm:$0xff]
    %v152 = vld [vmem:[#allocation7 + $0x160] sm:$0xff]
    %v153 = vld [vmem:[#allocation7 + $0x168] sm:$0xff]
    %v154 = vld [vmem:[#allocation7 + $0x170] sm:$0xff]
    %v155 = vld [vmem:[#allocation7 + $0x178] sm:$0xff]
    %v156 = vld [vmem:[#allocation7 + $0x180] sm:$0xff]
    %v157 = vld [vmem:[#allocation7 + $0x188] sm:$0xff]
    %v158 = vld [vmem:[#allocation7 + $0x190] sm:$0xff]
    %v159 = vld [vmem:[#allocation7 + $0x198] sm:$0xff]
    %v160 = vld [vmem:[#allocation7 + $0x1a0] sm:$0xff]
    %v161 = vld [vmem:[#allocation7 + $0x1a8] sm:$0xff]
    %v162 = vld [vmem:[#allocation7 + $0x1b0] sm:$0xff]
    %v163 = vld [vmem:[#allocation7 + $0x1b8] sm:$0xff]
    %v164 = vld [vmem:[#allocation7 + $0x1c0] sm:$0xff]
    %v165 = vld [vmem:[#allocation7 + $0x1c8] sm:$0xff]
    %v166 = vld [vmem:[#allocation7 + $0x1d0] sm:$0xff]
    %v167 = vld [vmem:[#allocation7 + $0x1d8] sm:$0xff]
    %v168 = vld [vmem:[#allocation7 + $0x1e0] sm:$0xff]
    %v169 = vld [vmem:[#allocation7 + $0x1e8] sm:$0xff]
    %v170 = vld [vmem:[#allocation7 + $0x1f0] sm:$0xff]
    %v171 = vld [vmem:[#allocation7 + $0x1f8] sm:$0xff]
    %v172 = vld [vmem:[#allocation2] sm:$0xff]
    %v173 = vld [vmem:[#allocation2 + $0x8] sm:$0xff]
    %v174 = vld [vmem:[#allocation2 + $0x10] sm:$0xff]
    %v175 = vld [vmem:[#allocation2 + $0x18] sm:$0xff]
    %v176 = vld [vmem:[#allocation2 + $0x20] sm:$0xff]
    %v177 = vld [vmem:[#allocation2 + $0x28] sm:$0xff]
    %v178 = vld [vmem:[#allocation2 + $0x30] sm:$0xff]
    %v179 = vld [vmem:[#allocation2 + $0x38] sm:$0xff]
    %v180 = vld [vmem:[#allocation2 + $0x40] sm:$0xff]
    %v181 = vld [vmem:[#allocation2 + $0x48] sm:$0xff]
    %v182 = vld [vmem:[#allocation2 + $0x50] sm:$0xff]
    %v183 = vld [vmem:[#allocation2 + $0x58] sm:$0xff]
    %v184 = vld [vmem:[#allocation2 + $0x60] sm:$0xff]
    %v185 = vld [vmem:[#allocation2 + $0x68] sm:$0xff]
    %v186 = vld [vmem:[#allocation2 + $0x70] sm:$0xff]
    %v187 = vld [vmem:[#allocation2 + $0x78] sm:$0xff]
    %v188 = vld [vmem:[#allocation2 + $0x80] sm:$0xff]
    %v189 = vld [vmem:[#allocation2 + $0x88] sm:$0xff]
    %v190 = vld [vmem:[#allocation2 + $0x90] sm:$0xff]
    %v191 = vld [vmem:[#allocation2 + $0x98] sm:$0xff]
    %v192 = vld [vmem:[#allocation2 + $0xa0] sm:$0xff]
    %v193 = vld [vmem:[#allocation2 + $0xa8] sm:$0xff]
    %v194 = vld [vmem:[#allocation2 + $0xb0] sm:$0xff]
    %v195 = vld [vmem:[#allocation2 + $0xb8] sm:$0xff]
    %v196 = vld [vmem:[#allocation2 + $0xc0] sm:$0xff]
    %v197 = vld [vmem:[#allocation2 + $0xc8] sm:$0xff]
    %v198 = vld [vmem:[#allocation2 + $0xd0] sm:$0xff]
    %v199 = vld [vmem:[#allocation2 + $0xd8] sm:$0xff]
    %v200 = vld [vmem:[#allocation2 + $0xe0] sm:$0xff]
    %v201 = vld [vmem:[#allocation2 + $0xe8] sm:$0xff]
    %v202 = vld [vmem:[#allocation2 + $0xf0] sm:$0xff]
    %v203 = vld [vmem:[#allocation2 + $0xf8] sm:$0xff]
    %v204 = vld [vmem:[#allocation5] sm:$0xff]
    %v205 = vld [vmem:[#allocation5 + $0x8] sm:$0xff]
    %v206 = vld [vmem:[#allocation5 + $0x10] sm:$0xff]
    %v207 = vld [vmem:[#allocation5 + $0x18] sm:$0xff]
    %v208 = vld [vmem:[#allocation5 + $0x20] sm:$0xff]
    %v209 = vld [vmem:[#allocation5 + $0x28] sm:$0xff]
    %v210 = vld [vmem:[#allocation5 + $0x30] sm:$0xff]
    %v211 = vld [vmem:[#allocation5 + $0x38] sm:$0xff]
    %v212 = vld [vmem:[#allocation5 + $0x40] sm:$0xff]
    %v213 = vld [vmem:[#allocation5 + $0x48] sm:$0xff]
    %v214 = vld [vmem:[#allocation5 + $0x50] sm:$0xff]
    %v215 = vld [vmem:[#allocation5 + $0x58] sm:$0xff]
    %v216 = vld [vmem:[#allocation5 + $0x60] sm:$0xff]
    %v217 = vld [vmem:[#allocation5 + $0x68] sm:$0xff]
    %v218 = vld [vmem:[#allocation5 + $0x70] sm:$0xff]
    %v219 = vld [vmem:[#allocation5 + $0x78] sm:$0xff]
    %v220 = vld [vmem:[#allocation5 + $0x80] sm:$0xff]
    %v221 = vld [vmem:[#allocation5 + $0x88] sm:$0xff]
    %v222 = vld [vmem:[#allocation5 + $0x90] sm:$0xff]
    %v223 = vld [vmem:[#allocation5 + $0x98] sm:$0xff]
    %v224 = vld [vmem:[#allocation5 + $0xa0] sm:$0xff]
    %v225 = vld [vmem:[#allocation5 + $0xa8] sm:$0xff]
    %v226 = vld [vmem:[#allocation5 + $0xb0] sm:$0xff]
    %v227 = vld [vmem:[#allocation5 + $0xb8] sm:$0xff]
    %v228 = vld [vmem:[#allocation5 + $0xc0] sm:$0xff]
    %v229 = vld [vmem:[#allocation5 + $0xc8] sm:$0xff]
    %v230 = vld [vmem:[#allocation5 + $0xd0] sm:$0xff]
    %v231 = vld [vmem:[#allocation5 + $0xd8] sm:$0xff]
    %v232 = vld [vmem:[#allocation5 + $0xe0] sm:$0xff]
    %v233 = vld [vmem:[#allocation5 + $0xe8] sm:$0xff]
    %v234 = vld [vmem:[#allocation5 + $0xf0] sm:$0xff]
    %v235 = vld [vmem:[#allocation5 + $0xf8] sm:$0xff]
    %v268 = vunpack.c.l.b16 %v172
    %v269 = vunpack.c.h.b16 %v172
    %v270 = vunpack.c.l.b16 %v173
    %v271 = vunpack.c.h.b16 %v173
    %v272 = vunpack.c.l.b16 %v174
    %v273 = vunpack.c.h.b16 %v174
    %v274 = vunpack.c.l.b16 %v175
    %v275 = vunpack.c.h.b16 %v175
    %v276 = vunpack.c.l.b16 %v176
    %v277 = vunpack.c.h.b16 %v176
    %v278 = vunpack.c.l.b16 %v177
    %v279 = vunpack.c.h.b16 %v177
    %v280 = vunpack.c.l.b16 %v178
    %v281 = vunpack.c.h.b16 %v178
    %v282 = vunpack.c.l.b16 %v179
    %v283 = vunpack.c.h.b16 %v179
    %v284 = vunpack.c.l.b16 %v180
    %v285 = vunpack.c.h.b16 %v180
    %v286 = vunpack.c.l.b16 %v181
    %v287 = vunpack.c.h.b16 %v181
    %v288 = vunpack.c.l.b16 %v182
    %v289 = vunpack.c.h.b16 %v182
    %v290 = vunpack.c.l.b16 %v183
    %v291 = vunpack.c.h.b16 %v183
    %v292 = vunpack.c.l.b16 %v184
    %v293 = vunpack.c.h.b16 %v184
    %v294 = vunpack.c.l.b16 %v185
    %v295 = vunpack.c.h.b16 %v185
    %v296 = vunpack.c.l.b16 %v186
    %v297 = vunpack.c.h.b16 %v186
    %v298 = vunpack.c.l.b16 %v187
    %v299 = vunpack.c.h.b16 %v187
    %v300 = vunpack.c.l.b16 %v188
    %v301 = vunpack.c.h.b16 %v188
    %v302 = vunpack.c.l.b16 %v189
    %v303 = vunpack.c.h.b16 %v189
    %v304 = vunpack.c.l.b16 %v190
    %v305 = vunpack.c.h.b16 %v190
    %v306 = vunpack.c.l.b16 %v191
    %v307 = vunpack.c.h.b16 %v191
    %v308 = vunpack.c.l.b16 %v192
    %v309 = vunpack.c.h.b16 %v192
    %v310 = vunpack.c.l.b16 %v193
    %v311 = vunpack.c.h.b16 %v193
    %v312 = vunpack.c.l.b16 %v194
    %v313 = vunpack.c.h.b16 %v194
    %v314 = vunpack.c.l.b16 %v195
    %v315 = vunpack.c.h.b16 %v195
    %v316 = vunpack.c.l.b16 %v196
    %v317 = vunpack.c.h.b16 %v196
    %v318 = vunpack.c.l.b16 %v197
    %v319 = vunpack.c.h.b16 %v197
    %v320 = vunpack.c.l.b16 %v198
    %v321 = vunpack.c.h.b16 %v198
    %v322 = vunpack.c.l.b16 %v199
    %v323 = vunpack.c.h.b16 %v199
    %v324 = vunpack.c.l.b16 %v200
    %v325 = vunpack.c.h.b16 %v200
    %v326 = vunpack.c.l.b16 %v201
    %v327 = vunpack.c.h.b16 %v201
    %v328 = vunpack.c.l.b16 %v202
    %v329 = vunpack.c.h.b16 %v202
    %v330 = vunpack.c.l.b16 %v203
    %v331 = vunpack.c.h.b16 %v203
    %v332 = vpack.c.b16 %v270, %v268
    %v333 = vpack.c.b16 %v271, %v269
    %v334 = vpack.c.b16 %v274, %v272
    %v335 = vpack.c.b16 %v275, %v273
    %v336 = vpack.c.b16 %v278, %v276
    %v337 = vpack.c.b16 %v279, %v277
    %v338 = vpack.c.b16 %v282, %v280
    %v339 = vpack.c.b16 %v283, %v281
    %v340 = vpack.c.b16 %v286, %v284
    %v341 = vpack.c.b16 %v287, %v285
    %v342 = vpack.c.b16 %v290, %v288
    %v343 = vpack.c.b16 %v291, %v289
    %v344 = vpack.c.b16 %v294, %v292
    %v345 = vpack.c.b16 %v295, %v293
    %v346 = vpack.c.b16 %v298, %v296
    %v347 = vpack.c.b16 %v299, %v297
    %v348 = vpack.c.b16 %v302, %v300
    %v349 = vpack.c.b16 %v303, %v301
    %v350 = vpack.c.b16 %v306, %v304
    %v351 = vpack.c.b16 %v307, %v305
    %v352 = vpack.c.b16 %v310, %v308
    %v353 = vpack.c.b16 %v311, %v309
    %v354 = vpack.c.b16 %v314, %v312
    %v355 = vpack.c.b16 %v315, %v313
    %v356 = vpack.c.b16 %v318, %v316
    %v357 = vpack.c.b16 %v319, %v317
    %v358 = vpack.c.b16 %v322, %v320
    %v359 = vpack.c.b16 %v323, %v321
    %v360 = vpack.c.b16 %v326, %v324
    %v361 = vpack.c.b16 %v327, %v325
    %v362 = vpack.c.b16 %v330, %v328
    %v363 = vpack.c.b16 %v331, %v329
    %v428 = vunpack.c.l.b16 %v204
    %v429 = vunpack.c.h.b16 %v204
    %v430 = vunpack.c.l.b16 %v205
    %v431 = vunpack.c.h.b16 %v205
    %v432 = vunpack.c.l.b16 %v206
    %v433 = vunpack.c.h.b16 %v206
    %v434 = vunpack.c.l.b16 %v207
    %v435 = vunpack.c.h.b16 %v207
    %v436 = vunpack.c.l.b16 %v208
    %v437 = vunpack.c.h.b16 %v208
    %v438 = vunpack.c.l.b16 %v209
    %v439 = vunpack.c.h.b16 %v209
    %v440 = vunpack.c.l.b16 %v210
    %v441 = vunpack.c.h.b16 %v210
    %v442 = vunpack.c.l.b16 %v211
    %v443 = vunpack.c.h.b16 %v211
    %v444 = vunpack.c.l.b16 %v212
    %v445 = vunpack.c.h.b16 %v212
    %v446 = vunpack.c.l.b16 %v213
    %v447 = vunpack.c.h.b16 %v213
    %v448 = vunpack.c.l.b16 %v214
    %v449 = vunpack.c.h.b16 %v214
    %v450 = vunpack.c.l.b16 %v215
    %v451 = vunpack.c.h.b16 %v215
    %v452 = vunpack.c.l.b16 %v216
    %v453 = vunpack.c.h.b16 %v216
    %v454 = vunpack.c.l.b16 %v217
    %v455 = vunpack.c.h.b16 %v217
    %v456 = vunpack.c.l.b16 %v218
    %v457 = vunpack.c.h.b16 %v218
    %v458 = vunpack.c.l.b16 %v219
    %v459 = vunpack.c.h.b16 %v219
    %v460 = vunpack.c.l.b16 %v220
    %v461 = vunpack.c.h.b16 %v220
    %v462 = vunpack.c.l.b16 %v221
    %v463 = vunpack.c.h.b16 %v221
    %v464 = vunpack.c.l.b16 %v222
    %v465 = vunpack.c.h.b16 %v222
    %v466 = vunpack.c.l.b16 %v223
    %v467 = vunpack.c.h.b16 %v223
    %v468 = vunpack.c.l.b16 %v224
    %v469 = vunpack.c.h.b16 %v224
    %v470 = vunpack.c.l.b16 %v225
    %v471 = vunpack.c.h.b16 %v225
    %v472 = vunpack.c.l.b16 %v226
    %v473 = vunpack.c.h.b16 %v226
    %v474 = vunpack.c.l.b16 %v227
    %v475 = vunpack.c.h.b16 %v227
    %v476 = vunpack.c.l.b16 %v228
    %v477 = vunpack.c.h.b16 %v228
    %v478 = vunpack.c.l.b16 %v229
    %v479 = vunpack.c.h.b16 %v229
    %v480 = vunpack.c.l.b16 %v230
    %v481 = vunpack.c.h.b16 %v230
    %v482 = vunpack.c.l.b16 %v231
    %v483 = vunpack.c.h.b16 %v231
    %v484 = vunpack.c.l.b16 %v232
    %v485 = vunpack.c.h.b16 %v232
    %v486 = vunpack.c.l.b16 %v233
    %v487 = vunpack.c.h.b16 %v233
    %v488 = vunpack.c.l.b16 %v234
    %v489 = vunpack.c.h.b16 %v234
    %v490 = vunpack.c.l.b16 %v235
    %v491 = vunpack.c.h.b16 %v235
    %v492 = vpack.c.b16 %v430, %v428
    %v493 = vpack.c.b16 %v431, %v429
    %v494 = vpack.c.b16 %v434, %v432
    %v495 = vpack.c.b16 %v435, %v433
    %v496 = vpack.c.b16 %v438, %v436
    %v497 = vpack.c.b16 %v439, %v437
    %v498 = vpack.c.b16 %v442, %v440
    %v499 = vpack.c.b16 %v443, %v441
    %v500 = vpack.c.b16 %v446, %v444
    %v501 = vpack.c.b16 %v447, %v445
    %v502 = vpack.c.b16 %v450, %v448
    %v503 = vpack.c.b16 %v451, %v449
    %v504 = vpack.c.b16 %v454, %v452
    %v505 = vpack.c.b16 %v455, %v453
    %v506 = vpack.c.b16 %v458, %v456
    %v507 = vpack.c.b16 %v459, %v457
    %v508 = vpack.c.b16 %v462, %v460
    %v509 = vpack.c.b16 %v463, %v461
    %v510 = vpack.c.b16 %v466, %v464
    %v511 = vpack.c.b16 %v467, %v465
    %v512 = vpack.c.b16 %v470, %v468
    %v513 = vpack.c.b16 %v471, %v469
    %v514 = vpack.c.b16 %v474, %v472
    %v515 = vpack.c.b16 %v475, %v473
    %v516 = vpack.c.b16 %v478, %v476
    %v517 = vpack.c.b16 %v479, %v477
    %v518 = vpack.c.b16 %v482, %v480
    %v519 = vpack.c.b16 %v483, %v481
    %v520 = vpack.c.b16 %v486, %v484
    %v521 = vpack.c.b16 %v487, %v485
    %v522 = vpack.c.b16 %v490, %v488
    %v523 = vpack.c.b16 %v491, %v489
    %556 = vmatprep.subr.bf16.mxu0 %v493
    %557 = vmatpush1.bf16.msra.mxu0 %v492
    %558 = vmatprep.subr.bf16.mxu0 %v495
    %559 = vmatpush1.bf16.msra.mxu0 %v494
    %560 = vmatprep.subr.bf16.mxu0 %v497
    %561 = vmatpush1.bf16.msra.mxu0 %v496
    %562 = vmatprep.subr.bf16.mxu0 %v499
    %563 = vmatpush1.bf16.msra.mxu0 %v498
    %564 = vmatprep.subr.bf16.mxu0 %v501
    %565 = vmatpush1.bf16.msra.mxu0 %v500
    %566 = vmatprep.subr.bf16.mxu0 %v503
    %567 = vmatpush1.bf16.msra.mxu0 %v502
    %568 = vmatprep.subr.bf16.mxu0 %v505
    %569 = vmatpush1.bf16.msra.mxu0 %v504
    %570 = vmatprep.subr.bf16.mxu0 %v507
    %571 = vmatpush1.bf16.msra.mxu0 %v506
    %572 = vmatprep.subr.bf16.mxu0 %v509
    %573 = vmatpush1.bf16.msra.mxu0 %v508
    %574 = vmatprep.subr.bf16.mxu0 %v511
    %575 = vmatpush1.bf16.msra.mxu0 %v510
    %576 = vmatprep.subr.bf16.mxu0 %v513
    %577 = vmatpush1.bf16.msra.mxu0 %v512
    %578 = vmatprep.subr.bf16.mxu0 %v515
    %579 = vmatpush1.bf16.msra.mxu0 %v514
    %580 = vmatprep.subr.bf16.mxu0 %v517
    %581 = vmatpush1.bf16.msra.mxu0 %v516
    %582 = vmatprep.subr.bf16.mxu0 %v519
    %583 = vmatpush1.bf16.msra.mxu0 %v518
    %584 = vmatprep.subr.bf16.mxu0 %v521
    %585 = vmatpush1.bf16.msra.mxu0 %v520
    %586 = vmatprep.subr.bf16.mxu0 %v523
    %587 = vmatpush1.bf16.msra.mxu0 %v522
    %588 = vmatprep.mubr.bf16.mxu0 %v333
    %589 = vmatmul.mubr.bf16.gmra.mrb[0].mxu0 %v332
    %v590 = vpop.f32.mrb[0].mxu0
    %v591 = vadd.f32 0.0, %v590
    %v592 = vpop.f32.mrb[0].mxu0
    %v593 = vadd.f32 0.0, %v592
    %v594 = vpop.f32.mrb[0].mxu0
    %v595 = vadd.f32 0.0, %v594
    %v596 = vpop.f32.mrb[0].mxu0
    %v597 = vadd.f32 0.0, %v596
    %598 = vmatprep.mubr.bf16.mxu0 %v335
    %599 = vmatmul.mubr.bf16.gmra.mrb[0].mxu0 %v334
    %v600 = vpop.f32.mrb[0].mxu0
    %v601 = vadd.f32 0.0, %v600
    %v602 = vpop.f32.mrb[0].mxu0
    %v603 = vadd.f32 0.0, %v602
    %v604 = vpop.f32.mrb[0].mxu0
    %v605 = vadd.f32 0.0, %v604
    %v606 = vpop.f32.mrb[0].mxu0
    %v607 = vadd.f32 0.0, %v606
    %608 = vmatprep.mubr.bf16.mxu0 %v337
    %609 = vmatmul.mubr.bf16.gmra.mrb[0].mxu0 %v336
    %v610 = vpop.f32.mrb[0].mxu0
    %v611 = vadd.f32 0.0, %v610
    %v612 = vpop.f32.mrb[0].mxu0
    %v613 = vadd.f32 0.0, %v612
    %v614 = vpop.f32.mrb[0].mxu0
    %v615 = vadd.f32 0.0, %v614
    %v616 = vpop.f32.mrb[0].mxu0
    %v617 = vadd.f32 0.0, %v616
    %618 = vmatprep.mubr.bf16.mxu0 %v339
    %619 = vmatmul.mubr.bf16.gmra.mrb[0].mxu0 %v338
    %v620 = vpop.f32.mrb[0].mxu0
    %v621 = vadd.f32 0.0, %v620
    %v622 = vpop.f32.mrb[0].mxu0
    %v623 = vadd.f32 0.0, %v622
    %v624 = vpop.f32.mrb[0].mxu0
    %v625 = vadd.f32 0.0, %v624
    %v626 = vpop.f32.mrb[0].mxu0
    %v627 = vadd.f32 0.0, %v626
    %628 = vmatprep.mubr.bf16.mxu0 %v341
    %629 = vmatmul.mubr.bf16.gmra.mrb[0].mxu0 %v340
    %v630 = vpop.f32.mrb[0].mxu0
    %v631 = vadd.f32 0.0, %v630
    %v632 = vpop.f32.mrb[0].mxu0
    %v633 = vadd.f32 0.0, %v632
    %v634 = vpop.f32.mrb[0].mxu0
    %v635 = vadd.f32 0.0, %v634
    %v636 = vpop.f32.mrb[0].mxu0
    %v637 = vadd.f32 0.0, %v636
    %638 = vmatprep.mubr.bf16.mxu0 %v343
    %639 = vmatmul.mubr.bf16.gmra.mrb[0].mxu0 %v342
    %v640 = vpop.f32.mrb[0].mxu0
    %v641 = vadd.f32 0.0, %v640
    %v642 = vpop.f32.mrb[0].mxu0
    %v643 = vadd.f32 0.0, %v642
    %v644 = vpop.f32.mrb[0].mxu0
    %v645 = vadd.f32 0.0, %v644
    %v646 = vpop.f32.mrb[0].mxu0
    %v647 = vadd.f32 0.0, %v646
    %648 = vmatprep.mubr.bf16.mxu0 %v345
    %649 = vmatmul.mubr.bf16.gmra.mrb[0].mxu0 %v344
    %v650 = vpop.f32.mrb[0].mxu0
    %v651 = vadd.f32 0.0, %v650
    %v652 = vpop.f32.mrb[0].mxu0
    %v653 = vadd.f32 0.0, %v652
    %v654 = vpop.f32.mrb[0].mxu0
    %v655 = vadd.f32 0.0, %v654
    %v656 = vpop.f32.mrb[0].mxu0
    %v657 = vadd.f32 0.0, %v656
    %658 = vmatprep.mubr.bf16.mxu0 %v347
    %659 = vmatmul.mubr.bf16.gmra.mrb[0].mxu0 %v346
    %v660 = vpop.f32.mrb[0].mxu0
    %v661 = vadd.f32 0.0, %v660
    %v662 = vpop.f32.mrb[0].mxu0
    %v663 = vadd.f32 0.0, %v662
    %v664 = vpop.f32.mrb[0].mxu0
    %v665 = vadd.f32 0.0, %v664
    %v666 = vpop.f32.mrb[0].mxu0
    %v667 = vadd.f32 0.0, %v666
    %668 = vmatprep.mubr.bf16.mxu0 %v349
    %669 = vmatmul.mubr.bf16.gmra.mrb[0].mxu0 %v348
    %v670 = vpop.f32.mrb[0].mxu0
    %v671 = vadd.f32 0.0, %v670
    %v672 = vpop.f32.mrb[0].mxu0
    %v673 = vadd.f32 0.0, %v672
    %v674 = vpop.f32.mrb[0].mxu0
    %v675 = vadd.f32 0.0, %v674
    %v676 = vpop.f32.mrb[0].mxu0
    %v677 = vadd.f32 0.0, %v676
    %678 = vmatprep.mubr.bf16.mxu0 %v351
    %679 = vmatmul.mubr.bf16.gmra.mrb[0].mxu0 %v350
    %v680 = vpop.f32.mrb[0].mxu0
    %v681 = vadd.f32 0.0, %v680
    %v682 = vpop.f32.mrb[0].mxu0
    %v683 = vadd.f32 0.0, %v682
    %v684 = vpop.f32.mrb[0].mxu0
    %v685 = vadd.f32 0.0, %v684
    %v686 = vpop.f32.mrb[0].mxu0
    %v687 = vadd.f32 0.0, %v686
    %688 = vmatprep.mubr.bf16.mxu0 %v353
    %689 = vmatmul.mubr.bf16.gmra.mrb[0].mxu0 %v352
    %v690 = vpop.f32.mrb[0].mxu0
    %v691 = vadd.f32 0.0, %v690
    %v692 = vpop.f32.mrb[0].mxu0
    %v693 = vadd.f32 0.0, %v692
    %v694 = vpop.f32.mrb[0].mxu0
    %v695 = vadd.f32 0.0, %v694
    %v696 = vpop.f32.mrb[0].mxu0
    %v697 = vadd.f32 0.0, %v696
    %698 = vmatprep.mubr.bf16.mxu0 %v355
    %699 = vmatmul.mubr.bf16.gmra.mrb[0].mxu0 %v354
    %v700 = vpop.f32.mrb[0].mxu0
    %v701 = vadd.f32 0.0, %v700
    %v702 = vpop.f32.mrb[0].mxu0
    %v703 = vadd.f32 0.0, %v702
    %v704 = vpop.f32.mrb[0].mxu0
    %v705 = vadd.f32 0.0, %v704
    %v706 = vpop.f32.mrb[0].mxu0
    %v707 = vadd.f32 0.0, %v706
    %708 = vmatprep.mubr.bf16.mxu0 %v357
    %709 = vmatmul.mubr.bf16.gmra.mrb[0].mxu0 %v356
    %v710 = vpop.f32.mrb[0].mxu0
    %v711 = vadd.f32 0.0, %v710
    %v712 = vpop.f32.mrb[0].mxu0
    %v713 = vadd.f32 0.0, %v712
    %v714 = vpop.f32.mrb[0].mxu0
    %v715 = vadd.f32 0.0, %v714
    %v716 = vpop.f32.mrb[0].mxu0
    %v717 = vadd.f32 0.0, %v716
    %718 = vmatprep.mubr.bf16.mxu0 %v359
    %719 = vmatmul.mubr.bf16.gmra.mrb[0].mxu0 %v358
    %v720 = vpop.f32.mrb[0].mxu0
    %v721 = vadd.f32 0.0, %v720
    %v722 = vpop.f32.mrb[0].mxu0
    %v723 = vadd.f32 0.0, %v722
    %v724 = vpop.f32.mrb[0].mxu0
    %v725 = vadd.f32 0.0, %v724
    %v726 = vpop.f32.mrb[0].mxu0
    %v727 = vadd.f32 0.0, %v726
    %728 = vmatprep.mubr.bf16.mxu0 %v361
    %729 = vmatmul.mubr.bf16.gmra.mrb[0].mxu0 %v360
    %v730 = vpop.f32.mrb[0].mxu0
    %v731 = vadd.f32 0.0, %v730
    %v732 = vpop.f32.mrb[0].mxu0
    %v733 = vadd.f32 0.0, %v732
    %v734 = vpop.f32.mrb[0].mxu0
    %v735 = vadd.f32 0.0, %v734
    %v736 = vpop.f32.mrb[0].mxu0
    %v737 = vadd.f32 0.0, %v736
    %738 = vmatprep.mubr.bf16.mxu0 %v363
    %739 = vmatmul.mubr.bf16.gmra.mrb[0].mxu0 %v362
    %v740 = vpop.f32.mrb[0].mxu0
    %v741 = vadd.f32 0.0, %v740
    %v742 = vpop.f32.mrb[0].mxu0
    %v743 = vadd.f32 0.0, %v742
    %v744 = vpop.f32.mrb[0].mxu0
    %v745 = vadd.f32 0.0, %v744
    %v746 = vpop.f32.mrb[0].mxu0
    %v747 = vadd.f32 0.0, %v746
    %748 = vdwg.mxu0
    %v749 = vadd.f32 %v108, %v591
    %v750 = vadd.f32 %v109, %v593
    %v751 = vadd.f32 %v110, %v595
    %v752 = vadd.f32 %v111, %v597
    %v753 = vadd.f32 %v112, %v601
    %v754 = vadd.f32 %v113, %v603
    %v755 = vadd.f32 %v114, %v605
    %v756 = vadd.f32 %v115, %v607
    %v757 = vadd.f32 %v116, %v611
    %v758 = vadd.f32 %v117, %v613
    %v759 = vadd.f32 %v118, %v615
    %v760 = vadd.f32 %v119, %v617
    %v761 = vadd.f32 %v120, %v621
    %v762 = vadd.f32 %v121, %v623
    %v763 = vadd.f32 %v122, %v625
    %v764 = vadd.f32 %v123, %v627
    %v765 = vadd.f32 %v124, %v631
    %v766 = vadd.f32 %v125, %v633
    %v767 = vadd.f32 %v126, %v635
    %v768 = vadd.f32 %v127, %v637
    %v769 = vadd.f32 %v128, %v641
    %v770 = vadd.f32 %v129, %v643
    %v771 = vadd.f32 %v130, %v645
    %v772 = vadd.f32 %v131, %v647
    %v773 = vadd.f32 %v132, %v651
    %v774 = vadd.f32 %v133, %v653
    %v775 = vadd.f32 %v134, %v655
    %v776 = vadd.f32 %v135, %v657
    %v777 = vadd.f32 %v136, %v661
    %v778 = vadd.f32 %v137, %v663
    %v779 = vadd.f32 %v138, %v665
    %v780 = vadd.f32 %v139, %v667
    %v781 = vadd.f32 %v140, %v671
    %v782 = vadd.f32 %v141, %v673
    %v783 = vadd.f32 %v142, %v675
    %v784 = vadd.f32 %v143, %v677
    %v785 = vadd.f32 %v144, %v681
    %v786 = vadd.f32 %v145, %v683
    %v787 = vadd.f32 %v146, %v685
    %v788 = vadd.f32 %v147, %v687
    %v789 = vadd.f32 %v148, %v691
    %v790 = vadd.f32 %v149, %v693
    %v791 = vadd.f32 %v150, %v695
    %v792 = vadd.f32 %v151, %v697
    %v793 = vadd.f32 %v152, %v701
    %v794 = vadd.f32 %v153, %v703
    %v795 = vadd.f32 %v154, %v705
    %v796 = vadd.f32 %v155, %v707
    %v797 = vadd.f32 %v156, %v711
    %v798 = vadd.f32 %v157, %v713
    %v799 = vadd.f32 %v158, %v715
    %v800 = vadd.f32 %v159, %v717
    %v801 = vadd.f32 %v160, %v721
    %v802 = vadd.f32 %v161, %v723
    %v803 = vadd.f32 %v162, %v725
    %v804 = vadd.f32 %v163, %v727
    %v805 = vadd.f32 %v164, %v731
    %v806 = vadd.f32 %v165, %v733
    %v807 = vadd.f32 %v166, %v735
    %v808 = vadd.f32 %v167, %v737
    %v809 = vadd.f32 %v168, %v741
    %v810 = vadd.f32 %v169, %v743
    %v811 = vadd.f32 %v170, %v745
    %v812 = vadd.f32 %v171, %v747
    %813 = vst [vmem:[#allocation7] sm:$0xff] %v749
    %814 = vst [vmem:[#allocation7 + $0x8] sm:$0xff] %v750
    %815 = vst [vmem:[#allocation7 + $0x10] sm:$0xff] %v751
    %816 = vst [vmem:[#allocation7 + $0x18] sm:$0xff] %v752
    %817 = vst [vmem:[#allocation7 + $0x20] sm:$0xff] %v753
    %818 = vst [vmem:[#allocation7 + $0x28] sm:$0xff] %v754
    %819 = vst [vmem:[#allocation7 + $0x30] sm:$0xff] %v755
    %820 = vst [vmem:[#allocation7 + $0x38] sm:$0xff] %v756
    %821 = vst [vmem:[#allocation7 + $0x40] sm:$0xff] %v757
    %822 = vst [vmem:[#allocation7 + $0x48] sm:$0xff] %v758
    %823 = vst [vmem:[#allocation7 + $0x50] sm:$0xff] %v759
    %824 = vst [vmem:[#allocation7 + $0x58] sm:$0xff] %v760
    %825 = vst [vmem:[#allocation7 + $0x60] sm:$0xff] %v761
    %826 = vst [vmem:[#allocation7 + $0x68] sm:$0xff] %v762
    %827 = vst [vmem:[#allocation7 + $0x70] sm:$0xff] %v763
    %828 = vst [vmem:[#allocation7 + $0x78] sm:$0xff] %v764
    %829 = vst [vmem:[#allocation7 + $0x80] sm:$0xff] %v765
    %830 = vst [vmem:[#allocation7 + $0x88] sm:$0xff] %v766
    %831 = vst [vmem:[#allocation7 + $0x90] sm:$0xff] %v767
    %832 = vst [vmem:[#allocation7 + $0x98] sm:$0xff] %v768
    %833 = vst [vmem:[#allocation7 + $0xa0] sm:$0xff] %v769
    %834 = vst [vmem:[#allocation7 + $0xa8] sm:$0xff] %v770
    %835 = vst [vmem:[#allocation7 + $0xb0] sm:$0xff] %v771
    %836 = vst [vmem:[#allocation7 + $0xb8] sm:$0xff] %v772
    %837 = vst [vmem:[#allocation7 + $0xc0] sm:$0xff] %v773
    %838 = vst [vmem:[#allocation7 + $0xc8] sm:$0xff] %v774
    %839 = vst [vmem:[#allocation7 + $0xd0] sm:$0xff] %v775
    %840 = vst [vmem:[#allocation7 + $0xd8] sm:$0xff] %v776
    %841 = vst [vmem:[#allocation7 + $0xe0] sm:$0xff] %v777
    %842 = vst [vmem:[#allocation7 + $0xe8] sm:$0xff] %v778
    %843 = vst [vmem:[#allocation7 + $0xf0] sm:$0xff] %v779
    %844 = vst [vmem:[#allocation7 + $0xf8] sm:$0xff] %v780
    %845 = vst [vmem:[#allocation7 + $0x100] sm:$0xff] %v781
    %846 = vst [vmem:[#allocation7 + $0x108] sm:$0xff] %v782
    %847 = vst [vmem:[#allocation7 + $0x110] sm:$0xff] %v783
    %848 = vst [vmem:[#allocation7 + $0x118] sm:$0xff] %v784
    %849 = vst [vmem:[#allocation7 + $0x120] sm:$0xff] %v785
    %850 = vst [vmem:[#allocation7 + $0x128] sm:$0xff] %v786
    %851 = vst [vmem:[#allocation7 + $0x130] sm:$0xff] %v787
    %852 = vst [vmem:[#allocation7 + $0x138] sm:$0xff] %v788
    %853 = vst [vmem:[#allocation7 + $0x140] sm:$0xff] %v789
    %854 = vst [vmem:[#allocation7 + $0x148] sm:$0xff] %v790
    %855 = vst [vmem:[#allocation7 + $0x150] sm:$0xff] %v791
    %856 = vst [vmem:[#allocation7 + $0x158] sm:$0xff] %v792
    %857 = vst [vmem:[#allocation7 + $0x160] sm:$0xff] %v793
    %858 = vst [vmem:[#allocation7 + $0x168] sm:$0xff] %v794
    %859 = vst [vmem:[#allocation7 + $0x170] sm:$0xff] %v795
    %860 = vst [vmem:[#allocation7 + $0x178] sm:$0xff] %v796
    %861 = vst [vmem:[#allocation7 + $0x180] sm:$0xff] %v797
    %862 = vst [vmem:[#allocation7 + $0x188] sm:$0xff] %v798
    %863 = vst [vmem:[#allocation7 + $0x190] sm:$0xff] %v799
    %864 = vst [vmem:[#allocation7 + $0x198] sm:$0xff] %v800
    %865 = vst [vmem:[#allocation7 + $0x1a0] sm:$0xff] %v801
    %866 = vst [vmem:[#allocation7 + $0x1a8] sm:$0xff] %v802
    %867 = vst [vmem:[#allocation7 + $0x1b0] sm:$0xff] %v803
    %868 = vst [vmem:[#allocation7 + $0x1b8] sm:$0xff] %v804
    %869 = vst [vmem:[#allocation7 + $0x1c0] sm:$0xff] %v805
    %870 = vst [vmem:[#allocation7 + $0x1c8] sm:$0xff] %v806
    %871 = vst [vmem:[#allocation7 + $0x1d0] sm:$0xff] %v807
    %872 = vst [vmem:[#allocation7 + $0x1d8] sm:$0xff] %v808
    %873 = vst [vmem:[#allocation7 + $0x1e0] sm:$0xff] %v809
    %874 = vst [vmem:[#allocation7 + $0x1e8] sm:$0xff] %v810
    %875 = vst [vmem:[#allocation7 + $0x1f0] sm:$0xff] %v811
    %876 = vst [vmem:[#allocation7 + $0x1f8] sm:$0xff] %v812
    // Predicated region
    $region22: #{tpu_custom_call.1} parent=1 // pred_check
      _
    $region23: #{tpu_custom_call.1} parent=1 // pred_check_branch
      %878 = sbr.rel (0) target = $region25
    $region24: #{tpu_custom_call.1} parent=1 // pred_region
      %s880 = ssub.s32 8192, 8192
      %881 = vsyncadd [#allocation4], %s880
      %s882 = sshll.u32 [#allocation7], 4
      %s883 = int_to_ptr.vmem [resolvable:$true] %s882
      %888 = dma.vmem_to_hbm [thread:$0]  %s883, 8192, %s2, [#allocation4], 256, 256, 16
    $region25: #{tpu_custom_call.1} parent=1 // pred_fallthru
      _
    // Predicated region
    $region26: #{tpu_custom_call.1} parent=1 // pred_check
      _
    $region27: #{tpu_custom_call.1} parent=1 // pred_check_branch
      %890 = sbr.rel (0) target = $region29
    $region28: #{tpu_custom_call.1} parent=1 // pred_region
      %891 = dma.done [#allocation4], 8192
    $region29: #{tpu_custom_call.1} parent=1 // pred_fallthru
      _
    %892 = vsyncpa [#allocation3], 1
    %893 = vsyncpa [#allocation6], 1
    %894 = vsyncpa [#allocation4], 1

</llo_original>
